<compile_context>
chip_gen: v7x
topology: tpu7x:2x2x1
jax: 0.10.0
libtpu: 0.0.40
codegen_flags: <defaults>
</compile_context>

<pallas_src>
import functools

import jax
import jax.numpy as jnp
from jax.experimental import pallas as pl
from jax.experimental.pallas import tpu as pltpu

EPS = 1e-5
LANE = 128


def _round_up(v, m):
    return ((v + m - 1) // m) * m


def _vmem_capacity_bytes():
    """Physical per-core VMEM (128 MiB on v5e/v6e, 64 MiB on v7x)."""
    try:
        cap = int(pltpu.get_tpu_info().vmem_capacity_bytes)
        if cap > 0:
            return cap
    except Exception:
        pass
    return 64 * 1024 * 1024  # conservative fallback (v7x physical)


def _budgets(itemsize):
    cap = _vmem_capacity_bytes()
    # Live-tile budget (double-buffered blocks + in-kernel temporaries) and
    # the scoped-VMEM limit handed to Mosaic.
    budget = min(cap // 2, 48 * 1024 * 1024)
    vmem_limit = int(min(cap * 3 // 4, 96 * 1024 * 1024))
    # Bytes per (row, col) element of an (rows, TC) tile:
    #   2x double-buffered input + 2x double-buffered output (itemsize each)
    #   + ~3 f32 in-kernel temporaries (upcast / centered / product).
    per_elem = 4 * itemsize + 12
    return budget, vmem_limit, per_elem


# ----------------------------------------------------------------------------
# Fused single-pass path: whole batch fits in one (N, TC) feature tile.
# ----------------------------------------------------------------------------
def _fused_bn_kernel(x_ref, gamma_ref, beta_ref, o_ref):
    # One (N, TC) feature tile: batch stats + normalize + folded affine.
    # Two-pass centered variance avoids E[x^2] - mean^2 cancellation.
    x = x_ref[...].astype(jnp.float32)                           # (N, TC)
    mean = jnp.mean(x, axis=0, keepdims=True)                    # (1, TC)
    centered = x - mean
    var = jnp.mean(centered * centered, axis=0, keepdims=True)   # biased var
    scale = jax.lax.rsqrt(var + EPS) * gamma_ref[...]            # fold affine
    o_ref[...] = (centered * scale + beta_ref[...]).astype(o_ref.dtype)


def _fused_forward(x, gamma, beta, budget, vmem_limit, per_elem):
    n, c = x.shape
    bytes_per_col = per_elem * max(_round_up(n, 8), 8)

    if c <= LANE:
        tc = c                         # full feature dim -> single block
        num_tiles = 1
    else:
        c128 = _round_up(c, LANE)
        tc_cap = max(LANE, (budget // bytes_per_col) // LANE * LANE)
        # >= 2 feature tiles whenever possible so the "parallel" grid axis
        # can be sharded across v7x's two TensorCores.
        tc_target = _round_up(pl.cdiv(c128, 2), LANE)
        tc = max(LANE, min(tc_cap, tc_target))
        num_tiles = pl.cdiv(c, tc)     # ragged last tile handled by Pallas

    cpad = num_tiles * tc              # only gamma/beta (tiny) are padded
    gamma2d = gamma.astype(jnp.float32).reshape(1, c)
    beta2d = beta.astype(jnp.float32).reshape(1, c)
    if cpad != c:
        gamma2d = jnp.pad(gamma2d, ((0, 0), (0, cpad - c)))
        beta2d = jnp.pad(beta2d, ((0, 0), (0, cpad - c)))

    return pl.pallas_call(
        _fused_bn_kernel,
        out_shape=jax.ShapeDtypeStruct((n, c), x.dtype),
        grid_spec=pltpu.PrefetchScalarGridSpec(
            num_scalar_prefetch=0,
            grid=(num_tiles,),
            in_specs=[
                pl.BlockSpec((n, tc), lambda i: (0, i)),
                pl.BlockSpec((1, tc), lambda i: (0, i)),
                pl.BlockSpec((1, tc), lambda i: (0, i)),
            ],
            out_specs=pl.BlockSpec((n, tc), lambda i: (0, i)),
        ),
        compiler_params=pltpu.CompilerParams(
            dimension_semantics=("parallel",),
            vmem_limit_bytes=vmem_limit,
        ),
    )(x, gamma2d, beta2d)


# ----------------------------------------------------------------------------
# Two-pass path for large N: batch-tiled stats kernel + normalize kernel.
# ----------------------------------------------------------------------------
def _stats_kernel(x_ref, sum_ref, sq_ref, *, n_total, tn):
    j = pl.program_id(1)

    @pl.when(j == 0)
    def _():
        sum_ref[...] = jnp.zeros_like(sum_ref)
        sq_ref[...] = jnp.zeros_like(sq_ref)

    x = x_ref[...].astype(jnp.float32)
    if n_total % tn != 0:
        # Ragged last batch tile: zero out-of-range rows so they do not
        # pollute the per-feature sums.
        row = jax.lax.broadcasted_iota(jnp.int32, x.shape, 0) + j * tn
        x = jnp.where(row < n_total, x, 0.0)
    sum_ref[...] += jnp.sum(x, axis=0, keepdims=True)
    sq_ref[...] += jnp.sum(x * x, axis=0, keepdims=True)


def _normalize_kernel(x_ref, scale_ref, bias_ref, o_ref):
    x = x_ref[...].astype(jnp.float32)
    o_ref[...] = (x * scale_ref[...] + bias_ref[...]).astype(o_ref.dtype)


def _two_pass_forward(x, gamma, beta, budget, vmem_limit, per_elem,
                      batch_tile=None):
    n, c = x.shape

    # ---- tile selection (no silent budget overrides) -----------------------
    min_tc = c if c <= LANE else LANE
    if batch_tile is not None:
        tn = max(8, _round_up(min(batch_tile, n), 8))
    else:
        tn = min(_round_up(n, 8), 1024)
        while tn > 8 and per_elem * tn * min_tc > budget:
            tn = max(8, (tn // 2) // 8 * 8)
    if c <= LANE:
        tc = c
    else:
        c128 = _round_up(c, LANE)
        tc_fit = max(LANE, (budget // (per_elem * tn)) // LANE * LANE)
        tc = min(tc_fit, _round_up(pl.cdiv(c128, 2), LANE))
    n_tiles = pl.cdiv(n, tn)
    c_tiles = pl.cdiv(c, tc)
    c_stats = c_tiles * tc

    # ---- pass 1: per-feature sum / sum-of-squares over the batch -----------
    ssum, ssq = pl.pallas_call(
        functools.partial(_stats_kernel, n_total=n, tn=tn),
        out_shape=(
            jax.ShapeDtypeStruct((1, c_stats), jnp.float32),
            jax.ShapeDtypeStruct((1, c_stats), jnp.float32),
        ),
        grid_spec=pltpu.PrefetchScalarGridSpec(
            num_scalar_prefetch=0,
            grid=(c_tiles, n_tiles),      # batch (reduction) axis innermost
            in_specs=[pl.BlockSpec((tn, tc), lambda i, j: (j, i))],
            out_specs=[
                pl.BlockSpec((1, tc), lambda i, j: (0, i)),
                pl.BlockSpec((1, tc), lambda i, j: (0, i)),
            ],
        ),
        compiler_params=pltpu.CompilerParams(
            dimension_semantics=("parallel", "arbitrary"),
            vmem_limit_bytes=vmem_limit,
        ),
    )(x)

    # ---- tiny (1, C) math in plain JAX: fold BN affine into scale/bias -----
    mean = ssum[:, :c] / n
    var = jnp.maximum(ssq[:, :c] / n - mean * mean, 0.0)
    scale = gamma.astype(jnp.float32).reshape(1, c) * jax.lax.rsqrt(var + EPS)
    bias = beta.astype(jnp.float32).reshape(1, c) - mean * scale
    if c_stats != c:
        scale = jnp.pad(scale, ((0, 0), (0, c_stats - c)))
        bias = jnp.pad(bias, ((0, 0), (0, c_stats - c)))

    # ---- pass 2: elementwise normalize (batch + feature tiled) -------------
    return pl.pallas_call(
        _normalize_kernel,
        out_shape=jax.ShapeDtypeStruct((n, c), x.dtype),
        grid_spec=pltpu.PrefetchScalarGridSpec(
            num_scalar_prefetch=0,
            grid=(c_tiles, n_tiles),
            in_specs=[
                pl.BlockSpec((tn, tc), lambda i, j: (j, i)),
                pl.BlockSpec((1, tc), lambda i, j: (0, i)),
                pl.BlockSpec((1, tc), lambda i, j: (0, i)),
            ],
            out_specs=pl.BlockSpec((tn, tc), lambda i, j: (j, i)),
        ),
        compiler_params=pltpu.CompilerParams(
            dimension_semantics=("parallel", "parallel"),
            vmem_limit_bytes=vmem_limit,
        ),
    )(x, scale, bias)


# ----------------------------------------------------------------------------
# Public forward
# ----------------------------------------------------------------------------
def bnneck_forward(x, gamma, beta, *, batch_tile=None):
    """BNNeck forward: BatchNorm1d with training-mode batch statistics.

    x: (N, C); gamma/beta: (C,).  `batch_tile` forces the batch-tiled
    two-pass path (automatically used when a full-batch column block does
    not fit the per-generation VMEM budget).
    """
    # TODO(synk): running_mean / running_var buffer updates (training-mode
    # side effect of nn.BatchNorm1d) are not reproduced; forward output only.
    n, c = x.shape
    itemsize = jnp.dtype(x.dtype).itemsize
    budget, vmem_limit, per_elem = _budgets(itemsize)

    min_tc = c if c <= LANE else LANE
    fused_fits = per_elem * max(_round_up(n, 8), 8) * min_tc <= budget
    if batch_tile is None and fused_fits:
        return _fused_forward(x, gamma, beta, budget, vmem_limit, per_elem)
    return _two_pass_forward(x, gamma, beta, budget, vmem_limit, per_elem,
                             batch_tile=batch_tile)


def bnneck_reference(x, gamma, beta):
    x32 = x.astype(jnp.float32)
    mean = jnp.mean(x32, axis=0, keepdims=True)
    var = jnp.mean((x32 - mean) ** 2, axis=0, keepdims=True)
    y = (x32 - mean) * jax.lax.rsqrt(var + EPS) * gamma.reshape(1, -1) \
        + beta.reshape(1, -1)
    return y.astype(x.dtype)


if __name__ == "__main__":
    key = jax.random.PRNGKey(0)
    kx, kg, kb, k2, k3 = jax.random.split(key, 5)

    # BNNeck(width=32, proj=False): BatchNorm1d over 32 features.
    batch, width = 8, 32
    x = jax.random.normal(kx, (batch, width), dtype=jnp.float32)
    gamma = jnp.ones((width,), dtype=jnp.float32)   # nn.BatchNorm1d defaults
    beta = jnp.zeros((width,), dtype=jnp.float32)

    out = jax.block_until_ready(bnneck_forward(x, gamma, beta))
    ref = bnneck_reference(x, gamma, beta)
    assert out.shape == (batch, width)
    assert jnp.allclose(out, ref, atol=1e-5, rtol=1e-5), "small-shape mismatch"

    # Fused multi-tile path (2 lane-dense feature tiles) with non-trivial
    # affine parameters.
    xb = jax.random.normal(k2, (64, 512), dtype=jnp.float32)
    gb = 0.5 + jax.random.uniform(kg, (512,), dtype=jnp.float32)
    bb = 0.1 * jax.random.normal(kb, (512,), dtype=jnp.float32)
    ob = jax.block_until_ready(bnneck_forward(xb, gb, bb))
    assert jnp.allclose(ob, bnneck_reference(xb, gb, bb), atol=1e-5, rtol=1e-5)

    # Batch-tiled two-pass path with ragged batch (70 % 32 != 0) and ragged
    # feature (200 % 128 != 0) boundary tiles.
    xc = jax.random.normal(k3, (70, 200), dtype=jnp.float32)
    gc = 0.5 + jax.random.uniform(kg, (200,), dtype=jnp.float32)
    bc = 0.1 * jax.random.normal(kb, (200,), dtype=jnp.float32)
    oc = jax.block_until_ready(bnneck_forward(xc, gc, bc, batch_tile=32))
    assert jnp.allclose(oc, bnneck_reference(xc, gc, bc), atol=1e-4, rtol=1e-4)

    print("KERNEL_OK")
</pallas_src>

<mosaic_0001>
module attributes {stable_mosaic.version = 11 : i64} {
  func.func @_fused_bn_kernel(%arg0: i32, %arg1: memref<8x32xf32, #tpu.memory_space<vmem>>, %arg2: memref<1x32xf32, #tpu.memory_space<vmem>>, %arg3: memref<1x32xf32, #tpu.memory_space<vmem>>, %arg4: memref<8x32xf32, #tpu.memory_space<vmem>>) attributes {dimension_semantics = [#tpu.dimension_semantics<parallel>], iteration_bounds = array<i64: 1>, scalar_prefetch = 0 : i64, scratch_operands = 0 : i64, tpu.core_type = #tpu.core_type<tc>, window_params = [{transform_indices = @transform_0, window_bounds = array<i64: 8, 32>}, {transform_indices = @transform_1, window_bounds = array<i64: 1, 32>}, {transform_indices = @transform_2, window_bounds = array<i64: 1, 32>}, {transform_indices = @transform_3, window_bounds = array<i64: 8, 32>}]} {
    %c0 = arith.constant 0 : index
    %c0_0 = arith.constant 0 : index
    %0 = vector.load %arg1[%c0, %c0_0] : memref<8x32xf32, #tpu.memory_space<vmem>>, vector<8x32xf32>
    %cst = arith.constant dense<0.000000e+00> : vector<32xf32>
    %1 = vector.multi_reduction <add>, %0, %cst [0] : vector<8x32xf32> to vector<32xf32>
    %2 = vector.shape_cast %1 : vector<32xf32> to vector<1x32xf32>
    %cst_1 = arith.constant 8.000000e+00 : f32
    %3 = vector.broadcast %cst_1 : f32 to vector<1x32xf32>
    %4 = arith.divf %2, %3 : vector<1x32xf32>
    %5 = vector.broadcast %4 : vector<1x32xf32> to vector<8x32xf32>
    %6 = arith.subf %0, %5 : vector<8x32xf32>
    %7 = arith.mulf %6, %6 : vector<8x32xf32>
    %cst_2 = arith.constant dense<0.000000e+00> : vector<32xf32>
    %8 = vector.multi_reduction <add>, %7, %cst_2 [0] : vector<8x32xf32> to vector<32xf32>
    %9 = vector.shape_cast %8 : vector<32xf32> to vector<1x32xf32>
    %cst_3 = arith.constant 8.000000e+00 : f32
    %10 = vector.broadcast %cst_3 : f32 to vector<1x32xf32>
    %11 = arith.divf %9, %10 : vector<1x32xf32>
    %cst_4 = arith.constant 9.99999974E-6 : f32
    %12 = vector.broadcast %cst_4 : f32 to vector<1x32xf32>
    %13 = arith.addf %11, %12 : vector<1x32xf32>
    %14 = math.rsqrt %13 : vector<1x32xf32>
    %c0_5 = arith.constant 0 : index
    %c0_6 = arith.constant 0 : index
    %15 = vector.load %arg2[%c0_5, %c0_6] : memref<1x32xf32, #tpu.memory_space<vmem>>, vector<1x32xf32>
    %16 = arith.mulf %14, %15 : vector<1x32xf32>
    %17 = vector.broadcast %16 : vector<1x32xf32> to vector<8x32xf32>
    %18 = arith.mulf %6, %17 : vector<8x32xf32>
    %c0_7 = arith.constant 0 : index
    %c0_8 = arith.constant 0 : index
    %19 = vector.load %arg3[%c0_7, %c0_8] : memref<1x32xf32, #tpu.memory_space<vmem>>, vector<1x32xf32>
    %20 = vector.broadcast %19 : vector<1x32xf32> to vector<8x32xf32>
    %21 = arith.addf %18, %20 : vector<8x32xf32>
    %c0_9 = arith.constant 0 : index
    %c0_10 = arith.constant 0 : index
    %22 = vector.load %arg4[%c0_9, %c0_10] : memref<8x32xf32, #tpu.memory_space<vmem>>, vector<8x32xf32>
    tpu.vector_store %arg4[%c0_9, %c0_10], %21 {strides = array<i32>} : memref<8x32xf32, #tpu.memory_space<vmem>>, vector<8x32xf32>,
    return
  }
  func.func @transform_0(%arg0: i32) -> (i32, i32) {
    %c0_i32 = arith.constant 0 : i32
    %c0_i32_0 = arith.constant 0 : i32
    return %c0_i32, %arg0 : i32, i32
  }
  func.func @transform_1(%arg0: i32) -> (i32, i32) {
    %c0_i32 = arith.constant 0 : i32
    %c0_i32_0 = arith.constant 0 : i32
    return %c0_i32, %arg0 : i32, i32
  }
  func.func @transform_2(%arg0: i32) -> (i32, i32) {
    %c0_i32 = arith.constant 0 : i32
    %c0_i32_0 = arith.constant 0 : i32
    return %c0_i32, %arg0 : i32, i32
  }
  func.func @transform_3(%arg0: i32) -> (i32, i32) {
    %c0_i32 = arith.constant 0 : i32
    %c0_i32_0 = arith.constant 0 : i32
    return %c0_i32, %arg0 : i32, i32
  }
}

</mosaic_0001>

<llo_original>
// kernel: tpu_custom_call.1
$region0: #{tpu_custom_call.1}
  #allocation0 [shape = 'u32[]', space=smem, size = 0x4, offset = 0x4, fixed_abs, tag = 'smem constant byte address 0x4 - core index']
  #allocation1 [shape = 'u32[144,128]{1,0:T(1,128)}', space=vmem, size = 0x12000, scoped, tag = 'internal scratch']
  %s0 = inlined_call_operand.hbm [shape: f32[8,32], index: 0, kind: input, shape index: {}]
  %s1 = inlined_call_operand.vmem [shape: f32[1,32], index: 1, kind: input, shape index: {}]
  %s2 = inlined_call_operand.vmem [shape: f32[1,32], index: 2, kind: input, shape index: {}]
  %s3 = inlined_call_operand.hbm [shape: f32[8,32], index: 3, kind: output, shape index: {}]
  %s4 = sld [smem:[#allocation0]]
  $region26: #{tpu_custom_call.1} parent=0
    _
  %s6 = ssub.s32 1, %s4
  %s7 = scalar_select 0, %s6, %s4
  $region1: #{tpu_custom_call.1} parent=0
    #allocation2 [shape = 'u8[4096]{0}', space=vmem, size = 0x1000, scoped, tag = 'input window, operand 0, single buffered']
    #allocation3 [shape = 's32[1]{0}', space=sflag, size = 0x4, scoped, tag = 'scoped memory for tpu_custom_call.1']
    #allocation4 [shape = 's32[1]{0}', space=sflag, size = 0x4, scoped, tag = 'scoped memory for tpu_custom_call.1']
    #allocation5 [shape = 'u8[4096]{0}', space=vmem, size = 0x1000, scoped, tag = 'output window, operand 0, single buffered']
    %8 = vsyncpa [#allocation3], 0
    %9 = vsyncpa [#allocation4], 0
    // Predicated region
    $region2: #{tpu_custom_call.1} parent=1 // pred_check
      _
    $region3: #{tpu_custom_call.1} parent=1 // pred_check_branch
      %11 = sbr.rel (0) target = $region5
    $region4: #{tpu_custom_call.1} parent=1 // pred_region
      %s13 = ssub.s32 128, 128
      %14 = vsyncadd [#allocation3], %s13
      %s16 = sshll.u32 [#allocation2], 4
      %s17 = int_to_ptr.vmem [resolvable:$true] %s16
      %19 = dma.hbm_to_vmem [thread:$0]  %s0, 128, %s17, [#allocation3]
    $region5: #{tpu_custom_call.1} parent=1 // pred_fallthru
      _
    // Predicated region
    $region6: #{tpu_custom_call.1} parent=1 // pred_check
      _
    $region7: #{tpu_custom_call.1} parent=1 // pred_check_branch
      %21 = sbr.rel (0) target = $region9
    $region8: #{tpu_custom_call.1} parent=1 // pred_region
      _
    $region9: #{tpu_custom_call.1} parent=1 // pred_fallthru
      _
    // Predicated region
    $region10: #{tpu_custom_call.1} parent=1 // pred_check
      _
    $region11: #{tpu_custom_call.1} parent=1 // pred_check_branch
      %23 = sbr.rel (0) target = $region13
    $region12: #{tpu_custom_call.1} parent=1 // pred_region
      _
    $region13: #{tpu_custom_call.1} parent=1 // pred_fallthru
      _
    // Predicated region
    $region14: #{tpu_custom_call.1} parent=1 // pred_check
      _
    $region15: #{tpu_custom_call.1} parent=1 // pred_check_branch
      %25 = sbr.rel (0) target = $region17
    $region16: #{tpu_custom_call.1} parent=1 // pred_region
      %26 = dma.done [#allocation3], 128
    $region17: #{tpu_custom_call.1} parent=1 // pred_fallthru
      _
    %v27 = vld [vmem:[#allocation2] sm:$0xff]
    %vm28 = vcmask 261120
    %v29 = vsel %vm28, %v27, 0.0
    %v30 = vrot.slane %v29, 4
    %v31 = vadd.f32 %v29, %v30
    %v32 = vrot.slane %v31, 2
    %v33 = vadd.f32 %v31, %v32
    %v34 = vrot.slane %v33, 1
    %v35 = vadd.f32 %v33, %v34
    %v36 = vrcp.pop 8.0
    %v37 = vmul.f32 %v35, %v36
    %v38 = vsub.f32 %v27, %v37
    %v39 = vmul.f32 %v38, %v38
    %v40 = vsel %vm28, %v39, 0.0
    %v41 = vrot.slane %v40, 4
    %v42 = vadd.f32 %v40, %v41
    %v43 = vrot.slane %v42, 2
    %v44 = vadd.f32 %v42, %v43
    %v45 = vrot.slane %v44, 1
    %v46 = vadd.f32 %v44, %v45
    %v47 = vmul.f32 %v46, %v36
    %v48 = vadd.f32 %v47, 1e-05
    %v49 = vrsqrt.pop %v48
    %v50 = vld [vmem:[%s1] sm:$0x1]
    %v51 = vmul.f32 %v49, %v50
    %v52 = vlaneseq
    %v53 = vshrl.u32 %v52, 7
    %v54 = vsub.s32 0, %v53
    %v55 = vrot.slane %v51, %v54
    %v56 = vmul.f32 %v38, %v55
    %v57 = vld [vmem:[%s2] sm:$0x1]
    %v59 = vlaneseq
    %v60 = vshrl.u32 %v59, 7
    %v61 = vsub.s32 0, %v60
    %v62 = vrot.slane %v57, %v61
    %v64 = vadd.f32 %v56, %v62
    %65 = vst.msk [vmem:[#allocation5] sm:$0xff] %vm28, %v64
    // Predicated region
    $region18: #{tpu_custom_call.1} parent=1 // pred_check
      _
    $region19: #{tpu_custom_call.1} parent=1 // pred_check_branch
      %67 = sbr.rel (0) target = $region21
    $region20: #{tpu_custom_call.1} parent=1 // pred_region
      %s69 = ssub.s32 128, 128
      %70 = vsyncadd [#allocation4], %s69
      %s72 = sshll.u32 [#allocation5], 4
      %s73 = int_to_ptr.vmem [resolvable:$true] %s72
      %75 = dma.vmem_to_hbm [thread:$0]  %s73, 128, %s3, [#allocation4]
    $region21: #{tpu_custom_call.1} parent=1 // pred_fallthru
      _
    // Predicated region
    $region22: #{tpu_custom_call.1} parent=1 // pred_check
      _
    $region23: #{tpu_custom_call.1} parent=1 // pred_check_branch
      %77 = sbr.rel (0) target = $region25
    $region24: #{tpu_custom_call.1} parent=1 // pred_region
      %78 = dma.done [#allocation4], 128
    $region25: #{tpu_custom_call.1} parent=1 // pred_fallthru
      _
    %79 = vsyncpa [#allocation3], 1
    %80 = vsyncpa [#allocation4], 1

</llo_original>
